<compile_context>
chip_gen: v6e
topology: v6e:2x2x1
jax: 0.10.0
libtpu: 0.0.40
codegen_flags: <defaults>
</compile_context>

<pallas_src>
import functools

import jax
import jax.numpy as jnp
from jax.experimental import pallas as pl
from jax.experimental.pallas import tpu as pltpu


def _round_up(a, b):
    return ((a + b - 1) // b) * b


def graphconv_kernel(adj_ref, x_ref, wt_ref, o_ref, acc_ref, *, apply_relu):
    k = pl.program_id(1)

    @pl.when(k == 0)
    def _():
        acc_ref[...] = jnp.zeros_like(acc_ref)

    # Partial h += adj_tile @ x_tile   (f32 accumulation on the MXU)
    acc_ref[...] += jnp.dot(
        adj_ref[...], x_ref[...], preferred_element_type=jnp.float32
    )

    @pl.when(k == pl.num_programs(1) - 1)
    def _():
        # y = h @ W^T   (second MXU matmul, fused in-kernel)
        y = jnp.dot(
            acc_ref[...].astype(wt_ref.dtype),
            wt_ref[...],
            preferred_element_type=jnp.float32,
        )
        if apply_relu:
            y = jnp.maximum(y, 0.0)
        o_ref[...] = y.astype(o_ref.dtype)


def graph_conv(adj, x, w, *, activation=None, compute_dtype=None, tm=256, tk=512):
    """Equivalent of GraphConv.forward(adj, x) with bias=False, eval-mode dropout.

    adj: (N, N) float32
    x:   (N, in_dim) float32
    w:   (out_dim, in_dim) float32   (PyTorch nn.Linear weight layout)
    activation: None or "relu"
    compute_dtype: dtype used for the streamed matmul operands (e.g. bf16 to
                   halve adj HBM traffic). Accumulation stays f32.
    """
    if activation not in (None, "relu"):
        raise ValueError(f"unsupported activation: {activation!r}")

    N, in_dim = x.shape
    out_dim = w.shape[0]
    out_dtype = x.dtype
    cdt = compute_dtype if compute_dtype is not None else x.dtype

    # Lane-dense padding of the feature dims (128) and tile-aligned padding of N.
    in_p = _round_up(in_dim, 128)
    out_p = _round_up(out_dim, 128)
    tm = min(tm, _round_up(N, 8))
    tk = min(tk, _round_up(N, 128))
    n_rows = _round_up(N, tm)
    n_cols = _round_up(N, tk)

    # Wrapper-side zero padding (glue reshape/pad stays outside the kernel).
    adj_p = jnp.pad(adj, ((0, n_rows - N), (0, n_cols - N))).astype(cdt)
    x_p = jnp.pad(x, ((0, n_cols - N), (0, in_p - in_dim))).astype(cdt)
    wt_p = jnp.pad(
        jnp.transpose(w), ((0, in_p - in_dim), (0, out_p - out_dim))
    ).astype(cdt)

    kernel = functools.partial(graphconv_kernel, apply_relu=(activation == "relu"))

    out_padded = pl.pallas_call(
        kernel,
        out_shape=jax.ShapeDtypeStruct((n_rows, out_p), out_dtype),
        grid_spec=pltpu.PrefetchScalarGridSpec(
            num_scalar_prefetch=0,
            grid=(n_rows // tm, n_cols // tk),
            in_specs=[
                pl.BlockSpec((tm, tk), lambda i, k: (i, k)),      # adj tile
                pl.BlockSpec((tk, in_p), lambda i, k: (k, 0)),    # x tile
                pl.BlockSpec((in_p, out_p), lambda i, k: (0, 0)), # W^T resident
            ],
            out_specs=pl.BlockSpec((tm, out_p), lambda i, k: (i, 0)),
            scratch_shapes=[pltpu.VMEM((tm, in_p), jnp.float32)],
        ),
        compiler_params=pltpu.CompilerParams(
            dimension_semantics=("parallel", "arbitrary"),
        ),
    )(adj_p, x_p, wt_p)

    return out_padded[:N, :out_dim]


def xavier_uniform(key, shape, dtype=jnp.float32):
    fan_out, fan_in = shape  # nn.Linear weight is (out_dim, in_dim)
    bound = (6.0 / (fan_in + fan_out)) ** 0.5
    return jax.random.uniform(key, shape, dtype=dtype, minval=-bound, maxval=bound)


if __name__ == "__main__":
    key = jax.random.PRNGKey(0)
    k_adj, k_x, k_w, k_adj2, k_x2 = jax.random.split(key, 5)

    def make_inputs(kadj, kx, n, in_dim):
        a = (jax.random.uniform(kadj, (n, n)) > 0.5).astype(jnp.float32)
        a = jnp.minimum(a + a.T + jnp.eye(n, dtype=jnp.float32), 1.0)
        adj = a / jnp.sum(a, axis=1, keepdims=True)  # row-normalized adjacency
        x = jax.random.normal(kx, (n, in_dim), dtype=jnp.float32)
        return adj, x

    in_dim, out_dim = 32, 64
    w = xavier_uniform(k_w, (out_dim, in_dim))

    # --- Small, module-sized test (single grid step). ---
    adj, x = make_inputs(k_adj, k_x, 16, in_dim)
    out = jax.block_until_ready(graph_conv(adj, x, w, activation=None))
    ref = (adj @ x) @ w.T
    assert out.shape == (16, out_dim)
    assert jnp.allclose(out, ref, atol=1e-4, rtol=1e-4)

    # --- ReLU activation path. ---
    out_r = jax.block_until_ready(graph_conv(adj, x, w, activation="relu"))
    assert jnp.allclose(out_r, jnp.maximum(ref, 0.0), atol=1e-4, rtol=1e-4)

    # --- Larger test exercising the (rows x K) tiled grid + accumulator. ---
    adj2, x2 = make_inputs(k_adj2, k_x2, 640, in_dim)
    out2 = jax.block_until_ready(graph_conv(adj2, x2, w))
    ref2 = (adj2 @ x2) @ w.T
    assert jnp.allclose(out2, ref2, atol=1e-3, rtol=1e-3)

    # --- bf16 streamed-operand path (halves adj HBM bytes; f32 accumulation). ---
    out_bf = jax.block_until_ready(
        graph_conv(adj2, x2, w, compute_dtype=jnp.bfloat16)
    )
    assert jnp.allclose(out_bf, ref2, atol=3e-2, rtol=3e-2)

    print("KERNEL_OK")
</pallas_src>

<mosaic_0001>
module attributes {stable_mosaic.version = 11 : i64} {
  func.func @graphconv_kernel(%arg0: i32, %arg1: i32, %arg2: memref<16x128xf32, #tpu.memory_space<vmem>>, %arg3: memref<128x128xf32, #tpu.memory_space<vmem>>, %arg4: memref<128x128xf32, #tpu.memory_space<vmem>>, %arg5: memref<16x128xf32, #tpu.memory_space<vmem>>, %arg6: memref<16x128xf32, #tpu.memory_space<vmem>>) attributes {dimension_semantics = [#tpu.dimension_semantics<parallel>, #tpu.dimension_semantics<arbitrary>], iteration_bounds = array<i64: 1, 1>, scalar_prefetch = 0 : i64, scratch_operands = 1 : i64, tpu.core_type = #tpu.core_type<tc>, window_params = [{transform_indices = @transform_0, window_bounds = array<i64: 16, 128>}, {transform_indices = @transform_1, window_bounds = array<i64: 128, 128>}, {pipeline_mode = #tpu.pipeline_mode<synchronous>, transform_indices = @transform_2, window_bounds = array<i64: 128, 128>}, {transform_indices = @transform_3, window_bounds = array<i64: 16, 128>}]} {
    %c0_i32 = arith.constant 0 : i32
    %0 = arith.cmpi eq, %arg1, %c0_i32 : i32
    %1 = arith.extui %0 : i1 to i32
    %c0_i32_0 = arith.constant 0 : i32
    %2 = arith.cmpi ne, %1, %c0_i32_0 : i32
    scf.if %2 {
      %cst_10 = arith.constant 0.000000e+00 : f32
      %12 = vector.broadcast %cst_10 : f32 to vector<16x128xf32>
      %c0_11 = arith.constant 0 : index
      %c0_12 = arith.constant 0 : index
      %13 = vector.load %arg6[%c0_11, %c0_12] : memref<16x128xf32, #tpu.memory_space<vmem>>, vector<16x128xf32>
      tpu.vector_store %arg6[%c0_11, %c0_12], %12 {strides = array<i32>} : memref<16x128xf32, #tpu.memory_space<vmem>>, vector<16x128xf32>,
    } else {
    }
    %c0 = arith.constant 0 : index
    %c0_1 = arith.constant 0 : index
    %3 = vector.load %arg6[%c0, %c0_1] : memref<16x128xf32, #tpu.memory_space<vmem>>, vector<16x128xf32>
    %c0_2 = arith.constant 0 : index
    %c0_3 = arith.constant 0 : index
    %4 = vector.load %arg2[%c0_2, %c0_3] : memref<16x128xf32, #tpu.memory_space<vmem>>, vector<16x128xf32>
    %c0_4 = arith.constant 0 : index
    %c0_5 = arith.constant 0 : index
    %5 = vector.load %arg3[%c0_4, %c0_5] : memref<128x128xf32, #tpu.memory_space<vmem>>, vector<128x128xf32>
    %cst = arith.constant dense<0.000000e+00> : vector<16x128xf32>
    %6 = tpu.matmul %4, %5, %cst {dimension_numbers = #tpu.dot_dimension_numbers<[1], [0], [0], [1], [0, 0, 1, 1], [], []>} : vector<16x128xf32>, vector<128x128xf32>, vector<16x128xf32> -> vector<16x128xf32>
    %7 = arith.addf %3, %6 : vector<16x128xf32>
    %c0_6 = arith.constant 0 : index
    %c0_7 = arith.constant 0 : index
    %8 = vector.load %arg6[%c0_6, %c0_7] : memref<16x128xf32, #tpu.memory_space<vmem>>, vector<16x128xf32>
    tpu.vector_store %arg6[%c0_6, %c0_7], %7 {strides = array<i32>} : memref<16x128xf32, #tpu.memory_space<vmem>>, vector<16x128xf32>,
    %c0_i32_8 = arith.constant 0 : i32
    %9 = arith.cmpi eq, %arg1, %c0_i32_8 : i32
    %10 = arith.extui %9 : i1 to i32
    %c0_i32_9 = arith.constant 0 : i32
    %11 = arith.cmpi ne, %10, %c0_i32_9 : i32
    scf.if %11 {
      %c0_10 = arith.constant 0 : index
      %c0_11 = arith.constant 0 : index
      %12 = vector.load %arg6[%c0_10, %c0_11] : memref<16x128xf32, #tpu.memory_space<vmem>>, vector<16x128xf32>
      %c0_12 = arith.constant 0 : index
      %c0_13 = arith.constant 0 : index
      %13 = vector.load %arg4[%c0_12, %c0_13] : memref<128x128xf32, #tpu.memory_space<vmem>>, vector<128x128xf32>
      %cst_14 = arith.constant dense<0.000000e+00> : vector<16x128xf32>
      %14 = tpu.matmul %12, %13, %cst_14 {dimension_numbers = #tpu.dot_dimension_numbers<[1], [0], [0], [1], [0, 0, 1, 1], [], []>} : vector<16x128xf32>, vector<128x128xf32>, vector<16x128xf32> -> vector<16x128xf32>
      %c0_15 = arith.constant 0 : index
      %c0_16 = arith.constant 0 : index
      %15 = vector.load %arg5[%c0_15, %c0_16] : memref<16x128xf32, #tpu.memory_space<vmem>>, vector<16x128xf32>
      tpu.vector_store %arg5[%c0_15, %c0_16], %14 {strides = array<i32>} : memref<16x128xf32, #tpu.memory_space<vmem>>, vector<16x128xf32>,
    } else {
    }
    return
  }
  func.func @transform_0(%arg0: i32, %arg1: i32) -> (i32, i32) {
    %c0_i32 = arith.constant 0 : i32
    return %arg0, %arg1 : i32, i32
  }
  func.func @transform_1(%arg0: i32, %arg1: i32) -> (i32, i32) {
    %c0_i32 = arith.constant 0 : i32
    %c0_i32_0 = arith.constant 0 : i32
    return %arg1, %c0_i32 : i32, i32
  }
  func.func @transform_2(%arg0: i32, %arg1: i32) -> (i32, i32) {
    %c0_i32 = arith.constant 0 : i32
    %c0_i32_0 = arith.constant 0 : i32
    %c0_i32_1 = arith.constant 0 : i32
    return %c0_i32, %c0_i32_0 : i32, i32
  }
  func.func @transform_3(%arg0: i32, %arg1: i32) -> (i32, i32) {
    %c0_i32 = arith.constant 0 : i32
    %c0_i32_0 = arith.constant 0 : i32
    return %arg0, %c0_i32 : i32, i32
  }
}

</mosaic_0001>

<llo_original>
// kernel: tpu_custom_call.1
$region0: #{tpu_custom_call.1}
  #allocation0 [shape = 'u32[]', space=smem, size = 0x4, offset = 0x4, fixed_abs, tag = 'smem constant byte address 0x4 - core index']
  #allocation1 [shape = 'u32[144,128]{1,0:T(1,128)}', space=vmem, size = 0x12000, scoped, tag = 'internal scratch']
  #allocation2 [shape = 'f32[16,128]{1,0:T(8,128)}', space=vmem, size = 0x2000, scoped, tag = 'scratch operand']
  %s0 = inlined_call_operand.hbm [shape: f32[16,128], index: 0, kind: input, shape index: {}]
  %s1 = inlined_call_operand.hbm [shape: f32[128,128], index: 1, kind: input, shape index: {}]
  %s2 = inlined_call_operand.hbm [shape: f32[128,128], index: 2, kind: input, shape index: {}]
  %s3 = inlined_call_operand.hbm [shape: f32[16,128], index: 3, kind: output, shape index: {}]
  %s4 = sld [smem:[#allocation0]]
  $region42: #{tpu_custom_call.1} parent=0
    _
  %s6 = ssub.s32 1, %s4
  %s7 = scalar_select 0, %s6, %s4
  $region1: #{tpu_custom_call.1} parent=0
    #allocation3 [shape = 'u8[8192]{0}', space=vmem, size = 0x2000, scoped, tag = 'input window, operand 0, single buffered']
    #allocation4 [shape = 's32[1]{0}', space=sflag, size = 0x4, scoped, tag = 'scoped memory for tpu_custom_call.1']
    #allocation5 [shape = 's32[1]{0}', space=sflag, size = 0x4, scoped, tag = 'scoped memory for tpu_custom_call.1']
    #allocation6 [shape = 'u8[65536]{0}', space=vmem, size = 0x10000, scoped, tag = 'input window, operand 1, single buffered']
    #allocation7 [shape = 's32[1]{0}', space=sflag, size = 0x4, scoped, tag = 'scoped memory for tpu_custom_call.1']
    #allocation8 [shape = 'u8[65536]{0}', space=vmem, size = 0x10000, scoped, tag = 'input window, operand 2, single buffered']
    #allocation9 [shape = 'u8[8192]{0}', space=vmem, size = 0x2000, scoped, tag = 'output window, operand 0, single buffered']
    %8 = vsyncpa [#allocation4], 0
    %9 = vsyncpa [#allocation7], 0
    %10 = vsyncpa [#allocation5], 0
    // Predicated region
    $region2: #{tpu_custom_call.1} parent=1 // pred_check
      _
    $region3: #{tpu_custom_call.1} parent=1 // pred_check_branch
      %12 = sbr.rel (0) target = $region5
    $region4: #{tpu_custom_call.1} parent=1 // pred_region
      %s14 = ssub.s32 256, 256
      %15 = vsyncadd [#allocation4], %s14
      %s16 = sshll.u32 [#allocation3], 4
      %s17 = int_to_ptr.vmem [resolvable:$true] %s16
      %22 = dma.hbm_to_vmem [thread:$0]  %s0, 256, %s17, [#allocation4], 128, 128, 8
    $region5: #{tpu_custom_call.1} parent=1 // pred_fallthru
      _
    // Predicated region
    $region6: #{tpu_custom_call.1} parent=1 // pred_check
      _
    $region7: #{tpu_custom_call.1} parent=1 // pred_check_branch
      %24 = sbr.rel (0) target = $region9
    $region8: #{tpu_custom_call.1} parent=1 // pred_region
      %s26 = ssub.s32 2048, 2048
      %27 = vsyncadd [#allocation7], %s26
      %s28 = sshll.u32 [#allocation6], 4
      %s29 = int_to_ptr.vmem [resolvable:$true] %s28
      %34 = dma.hbm_to_vmem [thread:$0]  %s1, 2048, %s29, [#allocation7], 128, 128, 8
    $region9: #{tpu_custom_call.1} parent=1 // pred_fallthru
      _
    // Predicated region
    $region10: #{tpu_custom_call.1} parent=1 // pred_check
      _
    $region11: #{tpu_custom_call.1} parent=1 // pred_check_branch
      %36 = sbr.rel (0) target = $region13
    $region12: #{tpu_custom_call.1} parent=1 // pred_region
      %s38 = ssub.s32 2048, 2048
      %39 = vsyncadd [#allocation7], %s38
      %s40 = sshll.u32 [#allocation8], 4
      %s41 = int_to_ptr.vmem [resolvable:$true] %s40
      %46 = dma.hbm_to_vmem [thread:$0]  %s2, 2048, %s41, [#allocation7], 128, 128, 8
    $region13: #{tpu_custom_call.1} parent=1 // pred_fallthru
      _
    // Predicated region
    $region14: #{tpu_custom_call.1} parent=1 // pred_check
      _
    $region15: #{tpu_custom_call.1} parent=1 // pred_check_branch
      %48 = sbr.rel (0) target = $region17
    $region16: #{tpu_custom_call.1} parent=1 // pred_region
      %49 = dma.done [#allocation4], 256
    $region17: #{tpu_custom_call.1} parent=1 // pred_fallthru
      _
    // Predicated region
    $region18: #{tpu_custom_call.1} parent=1 // pred_check
      _
    $region19: #{tpu_custom_call.1} parent=1 // pred_check_branch
      %51 = sbr.rel (0) target = $region21
    $region20: #{tpu_custom_call.1} parent=1 // pred_region
      %52 = dma.done [#allocation7], 2048
    $region21: #{tpu_custom_call.1} parent=1 // pred_fallthru
      _
    // Predicated region
    $region22: #{tpu_custom_call.1} parent=1 // pred_check
      _
    $region23: #{tpu_custom_call.1} parent=1 // pred_check_branch
      %54 = sbr.rel (0) target = $region25
    $region24: #{tpu_custom_call.1} parent=1 // pred_region
      %55 = dma.done [#allocation7], 2048
    $region25: #{tpu_custom_call.1} parent=1 // pred_fallthru
      _
    %p56 = scmp.eq.s32.totalorder 0, 0
    // Predicated region
    $region26: #{tpu_custom_call.1} parent=1 // pred_check
      %p57 = pneg %p56
    $region27: #{tpu_custom_call.1} parent=1 // pred_check_branch
      %59 = sbr.rel (%p57) target = $region29
    $region28: #{tpu_custom_call.1} parent=1 // pred_region
      %60 = vst [vmem:[#allocation2] sm:$0xff] 0.0
      %61 = vst [vmem:[#allocation2 + $0x8] sm:$0xff] 0.0
    $region29: #{tpu_custom_call.1} parent=1 // pred_fallthru
      _
    %v62 = vld [vmem:[#allocation2] sm:$0xff]
    %v63 = vld [vmem:[#allocation2 + $0x8] sm:$0xff]
    %v64 = vld [vmem:[#allocation3] sm:$0xff]
    %v65 = vld [vmem:[#allocation3 + $0x8] sm:$0xff]
    %v66 = vld [vmem:[#allocation6] sm:$0xff]
    %v67 = vld [vmem:[#allocation6 + $0x8] sm:$0xff]
    %v68 = vld [vmem:[#allocation6 + $0x10] sm:$0xff]
    %v69 = vld [vmem:[#allocation6 + $0x18] sm:$0xff]
    %v70 = vld [vmem:[#allocation6 + $0x20] sm:$0xff]
    %v71 = vld [vmem:[#allocation6 + $0x28] sm:$0xff]
    %v72 = vld [vmem:[#allocation6 + $0x30] sm:$0xff]
    %v73 = vld [vmem:[#allocation6 + $0x38] sm:$0xff]
    %v74 = vld [vmem:[#allocation6 + $0x40] sm:$0xff]
    %v75 = vld [vmem:[#allocation6 + $0x48] sm:$0xff]
    %v76 = vld [vmem:[#allocation6 + $0x50] sm:$0xff]
    %v77 = vld [vmem:[#allocation6 + $0x58] sm:$0xff]
    %v78 = vld [vmem:[#allocation6 + $0x60] sm:$0xff]
    %v79 = vld [vmem:[#allocation6 + $0x68] sm:$0xff]
    %v80 = vld [vmem:[#allocation6 + $0x70] sm:$0xff]
    %v81 = vld [vmem:[#allocation6 + $0x78] sm:$0xff]
    %82 = vmatprep.subr.mxu0 0.0
    %83 = vmatpush1.msra.mxu0 %v81
    %84 = vmatprep.subr.mxu0 0.0
    %85 = vmatpush1.msra.mxu0 %v80
    %86 = vmatprep.subr.mxu0 0.0
    %87 = vmatpush1.msra.mxu0 %v79
    %88 = vmatprep.subr.mxu0 0.0
    %89 = vmatpush1.msra.mxu0 %v78
    %90 = vmatprep.subr.mxu0 0.0
    %91 = vmatpush1.msra.mxu0 %v77
    %92 = vmatprep.subr.mxu0 0.0
    %93 = vmatpush1.msra.mxu0 %v76
    %94 = vmatprep.subr.mxu0 0.0
    %95 = vmatpush1.msra.mxu0 %v75
    %96 = vmatprep.subr.mxu0 0.0
    %97 = vmatpush1.msra.mxu0 %v74
    %98 = vmatprep.subr.mxu0 0.0
    %99 = vmatpush1.msra.mxu0 %v73
    %100 = vmatprep.subr.mxu0 0.0
    %101 = vmatpush1.msra.mxu0 %v72
    %102 = vmatprep.subr.mxu0 0.0
    %103 = vmatpush1.msra.mxu0 %v71
    %104 = vmatprep.subr.mxu0 0.0
    %105 = vmatpush1.msra.mxu0 %v70
    %106 = vmatprep.subr.mxu0 0.0
    %107 = vmatpush1.msra.mxu0 %v69
    %108 = vmatprep.subr.mxu0 0.0
    %109 = vmatpush1.msra.mxu0 %v68
    %110 = vmatprep.subr.mxu0 0.0
    %111 = vmatpush1.msra.mxu0 %v67
    %112 = vmatprep.subr.mxu0 0.0
    %113 = vmatpush1.msra.mxu0 %v66
    %114 = vmatprep.subr.mxu0 0.0
    %115 = vmatpush2.msra.mxu0 0.0
    %116 = vmatprep.subr.mxu0 0.0
    %117 = vmatpush2.msra.mxu0 0.0
    %118 = vmatprep.subr.mxu0 0.0
    %119 = vmatpush2.msra.mxu0 0.0
    %120 = vmatprep.subr.mxu0 0.0
    %121 = vmatpush2.msra.mxu0 0.0
    %122 = vmatprep.subr.mxu0 0.0
    %123 = vmatpush2.msra.mxu0 0.0
    %124 = vmatprep.subr.mxu0 0.0
    %125 = vmatpush2.msra.mxu0 0.0
    %126 = vmatprep.subr.mxu0 0.0
    %127 = vmatpush2.msra.mxu0 0.0
    %128 = vmatprep.subr.mxu0 0.0
    %129 = vmatpush2.msra.mxu0 0.0
    %130 = vmatprep.subr.mxu0 0.0
    %131 = vmatpush2.msra.mxu0 0.0
    %132 = vmatprep.subr.mxu0 0.0
    %133 = vmatpush2.msra.mxu0 0.0
    %134 = vmatprep.subr.mxu0 0.0
    %135 = vmatpush2.msra.mxu0 0.0
    %136 = vmatprep.subr.mxu0 0.0
    %137 = vmatpush2.msra.mxu0 0.0
    %138 = vmatprep.subr.mxu0 0.0
    %139 = vmatpush2.msra.mxu0 0.0
    %140 = vmatprep.subr.mxu0 0.0
    %141 = vmatpush2.msra.mxu0 0.0
    %142 = vmatprep.subr.mxu0 0.0
    %143 = vmatpush2.msra.mxu0 0.0
    %144 = vmatprep.subr.mxu0 0.0
    %145 = vmatpush2.msra.mxu0 0.0
    %146 = vmatprep.mubr.f32.mxu0 0.0
    %147 = vmatmul.mubr.f32.gmra.mxu0 %v64
    %v148 = vpop.f32.mrf.mxu0
    %v149 = vadd.f32 0.0, %v148
    %v150 = vpop.f32.mrf.mxu0
    %151 = vmatprep.mubr.f32.mxu0 0.0
    %152 = vmatmul.mubr.f32.gmra.mxu0 %v65
    %v153 = vpop.f32.mrf.mxu0
    %v154 = vadd.f32 0.0, %v153
    %v155 = vpop.f32.mrf.mxu0
    %156 = vdwg.mxu0
    %v157 = vadd.f32 %v62, %v149
    %v158 = vadd.f32 %v63, %v154
    %159 = vst [vmem:[#allocation2] sm:$0xff] %v157
    %160 = vst [vmem:[#allocation2 + $0x8] sm:$0xff] %v158
    // Predicated region
    $region30: #{tpu_custom_call.1} parent=1 // pred_check
      %p161 = pneg %p56
    $region31: #{tpu_custom_call.1} parent=1 // pred_check_branch
      %163 = sbr.rel (%p161) target = $region33
    $region32: #{tpu_custom_call.1} parent=1 // pred_region
      %v164 = vld [vmem:[#allocation2] sm:$0xff]
      %v165 = vld [vmem:[#allocation2 + $0x8] sm:$0xff]
      %v166 = vld [vmem:[#allocation8] sm:$0xff]
      %v167 = vld [vmem:[#allocation8 + $0x8] sm:$0xff]
      %v168 = vld [vmem:[#allocation8 + $0x10] sm:$0xff]
      %v169 = vld [vmem:[#allocation8 + $0x18] sm:$0xff]
      %v170 = vld [vmem:[#allocation8 + $0x20] sm:$0xff]
      %v171 = vld [vmem:[#allocation8 + $0x28] sm:$0xff]
      %v172 = vld [vmem:[#allocation8 + $0x30] sm:$0xff]
      %v173 = vld [vmem:[#allocation8 + $0x38] sm:$0xff]
      %v174 = vld [vmem:[#allocation8 + $0x40] sm:$0xff]
      %v175 = vld [vmem:[#allocation8 + $0x48] sm:$0xff]
      %v176 = vld [vmem:[#allocation8 + $0x50] sm:$0xff]
      %v177 = vld [vmem:[#allocation8 + $0x58] sm:$0xff]
      %v178 = vld [vmem:[#allocation8 + $0x60] sm:$0xff]
      %v179 = vld [vmem:[#allocation8 + $0x68] sm:$0xff]
      %v180 = vld [vmem:[#allocation8 + $0x70] sm:$0xff]
      %v181 = vld [vmem:[#allocation8 + $0x78] sm:$0xff]
      %182 = vmatprep.subr.mxu0 0.0
      %183 = vmatpush1.msra.mxu0 %v181
      %184 = vmatprep.subr.mxu0 0.0
      %185 = vmatpush1.msra.mxu0 %v180
      %186 = vmatprep.subr.mxu0 0.0
      %187 = vmatpush1.msra.mxu0 %v179
      %188 = vmatprep.subr.mxu0 0.0
      %189 = vmatpush1.msra.mxu0 %v178
      %190 = vmatprep.subr.mxu0 0.0
      %191 = vmatpush1.msra.mxu0 %v177
      %192 = vmatprep.subr.mxu0 0.0
      %193 = vmatpush1.msra.mxu0 %v176
      %194 = vmatprep.subr.mxu0 0.0
      %195 = vmatpush1.msra.mxu0 %v175
      %196 = vmatprep.subr.mxu0 0.0
      %197 = vmatpush1.msra.mxu0 %v174
      %198 = vmatprep.subr.mxu0 0.0
      %199 = vmatpush1.msra.mxu0 %v173
      %200 = vmatprep.subr.mxu0 0.0
      %201 = vmatpush1.msra.mxu0 %v172
      %202 = vmatprep.subr.mxu0 0.0
      %203 = vmatpush1.msra.mxu0 %v171
      %204 = vmatprep.subr.mxu0 0.0
      %205 = vmatpush1.msra.mxu0 %v170
      %206 = vmatprep.subr.mxu0 0.0
      %207 = vmatpush1.msra.mxu0 %v169
      %208 = vmatprep.subr.mxu0 0.0
      %209 = vmatpush1.msra.mxu0 %v168
      %210 = vmatprep.subr.mxu0 0.0
      %211 = vmatpush1.msra.mxu0 %v167
      %212 = vmatprep.subr.mxu0 0.0
      %213 = vmatpush1.msra.mxu0 %v166
      %214 = vmatprep.subr.mxu0 0.0
      %215 = vmatpush2.msra.mxu0 0.0
      %216 = vmatprep.subr.mxu0 0.0
      %217 = vmatpush2.msra.mxu0 0.0
      %218 = vmatprep.subr.mxu0 0.0
      %219 = vmatpush2.msra.mxu0 0.0
      %220 = vmatprep.subr.mxu0 0.0
      %221 = vmatpush2.msra.mxu0 0.0
      %222 = vmatprep.subr.mxu0 0.0
      %223 = vmatpush2.msra.mxu0 0.0
      %224 = vmatprep.subr.mxu0 0.0
      %225 = vmatpush2.msra.mxu0 0.0
      %226 = vmatprep.subr.mxu0 0.0
      %227 = vmatpush2.msra.mxu0 0.0
      %228 = vmatprep.subr.mxu0 0.0
      %229 = vmatpush2.msra.mxu0 0.0
      %230 = vmatprep.subr.mxu0 0.0
      %231 = vmatpush2.msra.mxu0 0.0
      %232 = vmatprep.subr.mxu0 0.0
      %233 = vmatpush2.msra.mxu0 0.0
      %234 = vmatprep.subr.mxu0 0.0
      %235 = vmatpush2.msra.mxu0 0.0
      %236 = vmatprep.subr.mxu0 0.0
      %237 = vmatpush2.msra.mxu0 0.0
      %238 = vmatprep.subr.mxu0 0.0
      %239 = vmatpush2.msra.mxu0 0.0
      %240 = vmatprep.subr.mxu0 0.0
      %241 = vmatpush2.msra.mxu0 0.0
      %242 = vmatprep.subr.mxu0 0.0
      %243 = vmatpush2.msra.mxu0 0.0
      %244 = vmatprep.subr.mxu0 0.0
      %245 = vmatpush2.msra.mxu0 0.0
      %246 = vmatprep.mubr.f32.mxu0 0.0
      %247 = vmatmul.mubr.f32.gmra.mxu0 %v164
      %v248 = vpop.f32.mrf.mxu0
      %v249 = vadd.f32 0.0, %v248
      %v250 = vpop.f32.mrf.mxu0
      %251 = vmatprep.mubr.f32.mxu0 0.0
      %252 = vmatmul.mubr.f32.gmra.mxu0 %v165
      %v253 = vpop.f32.mrf.mxu0
      %v254 = vadd.f32 0.0, %v253
      %v255 = vpop.f32.mrf.mxu0
      %256 = vdwg.mxu0
      %257 = vst [vmem:[#allocation9] sm:$0xff] %v249
      %258 = vst [vmem:[#allocation9 + $0x8] sm:$0xff] %v254
    $region33: #{tpu_custom_call.1} parent=1 // pred_fallthru
      _
    // Predicated region
    $region34: #{tpu_custom_call.1} parent=1 // pred_check
      _
    $region35: #{tpu_custom_call.1} parent=1 // pred_check_branch
      %260 = sbr.rel (0) target = $region37
    $region36: #{tpu_custom_call.1} parent=1 // pred_region
      %s262 = ssub.s32 256, 256
      %263 = vsyncadd [#allocation5], %s262
      %s264 = sshll.u32 [#allocation9], 4
      %s265 = int_to_ptr.vmem [resolvable:$true] %s264
      %270 = dma.vmem_to_hbm [thread:$0]  %s265, 256, %s3, [#allocation5], 128, 128, 8
    $region37: #{tpu_custom_call.1} parent=1 // pred_fallthru
      _
    // Predicated region
    $region38: #{tpu_custom_call.1} parent=1 // pred_check
      _
    $region39: #{tpu_custom_call.1} parent=1 // pred_check_branch
      %272 = sbr.rel (0) target = $region41
    $region40: #{tpu_custom_call.1} parent=1 // pred_region
      %273 = dma.done [#allocation5], 256
    $region41: #{tpu_custom_call.1} parent=1 // pred_fallthru
      _
    %274 = vsyncpa [#allocation4], 1
    %275 = vsyncpa [#allocation7], 1
    %276 = vsyncpa [#allocation5], 1

</llo_original>
